<compile_context>
chip_gen: v6e
topology: v6e:2x2x1
jax: 0.10.0
libtpu: 0.0.40
codegen_flags: <defaults>
</compile_context>

<pallas_src>
import functools

import jax
import jax.numpy as jnp
from jax.experimental import pallas as pl
from jax.experimental.pallas import tpu as pltpu

MIN_NORM = 1e-15       # matches manifolds.PoincareBall min_norm
BALL_EPS_F32 = 4e-3    # matches PoincareBall eps for float32


def _round_up(v, m):
    return (v + m - 1) // m * m


def _artanh(z):
    z = jnp.clip(z, -1.0 + 1e-7, 1.0 - 1e-7)
    return 0.5 * jnp.log((1.0 + z) / (1.0 - z))


def hyp_linear_kernel(x_ref, wt_ref, hb_ref, o_ref, *, c, y2):
    """One row tile of the hyperbolic linear layer.

    x_ref : (TM, IN_P)    points on the ball (native dtype; f32 kept for norm path)
    wt_ref: (IN_P, OUT_P) pre-transposed weight (bf16 MXU operand, single-buffered)
    hb_ref: (1, OUT_P)    precomputed proj(expmap0(bias, c), c), f32
    o_ref : (TM, OUT_P)
    """
    sqrt_c = c ** 0.5
    inv_sqrt_c = 1.0 / sqrt_c
    maxnorm = (1.0 - BALL_EPS_F32) / sqrt_c
    cy2 = c * y2                     # grid-invariant constants (hoisted to wrapper)
    c2y2 = c * c * y2

    x = x_ref[...]
    wt = wt_ref[...]
    hb = hb_ref[...].astype(jnp.float32)

    # ---- Mobius matvec: bf16 MXU matmul, f32 accumulation ----
    mx = jnp.dot(x.astype(wt.dtype), wt, preferred_element_type=jnp.float32)

    # Norm / artanh path stays on the ORIGINAL f32 x (boundary precision).
    xf = x.astype(jnp.float32)
    x_norm = jnp.maximum(jnp.sqrt(jnp.sum(xf * xf, axis=-1, keepdims=True)), MIN_NORM)
    mx_sq = jnp.sum(mx * mx, axis=-1, keepdims=True)
    mx_norm = jnp.maximum(jnp.sqrt(mx_sq), MIN_NORM)
    zero_row = mx_sq == 0.0                                   # reuses mx_sq

    # ---- (TM,1) column work: scale, analytic ||res||, folded proj clip ----
    tanh_val = jnp.tanh(mx_norm * pl.reciprocal(x_norm, approx=True)
                        * _artanh(sqrt_c * x_norm))
    res_norm = tanh_val * inv_sqrt_c                          # ||res|| analytically (exact)
    scale = res_norm * pl.reciprocal(mx_norm, approx=True)
    clip = jnp.minimum(1.0, maxnorm * pl.reciprocal(jnp.maximum(res_norm, MIN_NORM),
                                                    approx=True))
    scale_eff = jnp.where(zero_row, 0.0, scale * clip)
    res_norm_c = jnp.where(zero_row, 0.0, jnp.minimum(res_norm, maxnorm))
    x2 = res_norm_c * res_norm_c

    res = scale_eff * mx                                      # single full-tile multiply

    # ---- Mobius addition: res (+)_c hyp_b (y2 precomputed in wrapper) ----
    xy = jnp.sum(res * hb, axis=-1, keepdims=True)            # (TM,1)
    two_cxy = 2.0 * c * xy
    num = (1.0 + two_cxy + cy2) * res + (1.0 - c * x2) * hb
    den = jnp.maximum(1.0 + two_cxy + c2y2 * x2, MIN_NORM)
    out = num * (1.0 / den)                                   # exact per-row recip, bcast mul

    # ---- final projection: exact per-row reciprocal, broadcast multiply ----
    out_norm = jnp.maximum(jnp.sqrt(jnp.sum(out * out, axis=-1, keepdims=True)),
                           MIN_NORM)
    inv = maxnorm / out_norm                                  # exact, (TM,1) only
    out = jnp.where(out_norm > maxnorm, out * inv, out)

    o_ref[...] = out.astype(o_ref.dtype)


def make_hyperbolic_linear(weight, bias, *, c=1.0, nonlin=None, tile_m=256,
                           mxu_dtype=jnp.bfloat16):
    """One-time parameter prep + a jitted apply(x) closure.

    weight: (out_f, in_f); bias: (out_f,). apply(x: (N, in_f)) -> (N, out_f).
    """
    out_f, in_f = weight.shape
    c = float(c)
    sqrt_c = c ** 0.5
    maxnorm = (1.0 - BALL_EPS_F32) / sqrt_c

    in_p = _round_up(in_f, 128)
    out_p = _round_up(out_f, 128)

    # ---- one-time weight prep (NOT on the per-call path) ----
    wt_p = jnp.pad(jnp.asarray(weight).astype(mxu_dtype).T,
                   ((0, in_p - in_f), (0, out_p - out_f)))

    # ---- bias path hoisted: hb = proj(expmap0(bias, c), c); plus y2 constant ----
    bf = jnp.asarray(bias, jnp.float32).reshape(1, out_f)
    b_norm = jnp.maximum(jnp.sqrt(jnp.sum(bf * bf, axis=-1, keepdims=True)), MIN_NORM)
    hyp_b = jnp.tanh(sqrt_c * b_norm) * bf / (sqrt_c * b_norm)
    hb_norm = jnp.maximum(jnp.sqrt(jnp.sum(hyp_b * hyp_b, axis=-1, keepdims=True)),
                          MIN_NORM)
    hyp_b = jnp.where(hb_norm > maxnorm, hyp_b / hb_norm * maxnorm, hyp_b)
    y2 = float(jnp.sum(hyp_b * hyp_b))            # grid-invariant -> closure constant
    hb_p = jnp.pad(hyp_b, ((0, 0), (0, out_p - out_f)))

    kernel = functools.partial(hyp_linear_kernel, c=c, y2=y2)

    @jax.jit
    def apply(x):
        n = x.shape[0]
        assert x.shape[1] == in_f
        # bf16 packs 2 rows/sublane -> 16-row tiles; f32 -> 8. Sweep tile_m 256-512.
        row_align = 16 if x.dtype == jnp.bfloat16 else 8
        tm = min(_round_up(max(tile_m, row_align), row_align),
                 _round_up(n, row_align))
        grid_m = pl.cdiv(n, tm)       # ragged last tile; OOB rows dropped on store

        # Pad features only (lane-dense x128); rows handled by the ragged tile.
        x_p = x if in_p == in_f else jnp.pad(x, ((0, 0), (0, in_p - in_f)))

        # VMEM budget derived from the actual tiling (W^T single-buffered).
        x_tile_b = tm * in_p * x_p.dtype.itemsize
        out_tile_b = tm * out_p * jnp.dtype(x.dtype).itemsize
        w_b = in_p * out_p * wt_p.dtype.itemsize
        f32_tmp_b = 6 * tm * out_p * 4              # mx/res/num/out-class temporaries
        vmem_limit = int(min(max(2 * x_tile_b + w_b + 2 * out_tile_b
                                 + 2 * out_p * 4 + f32_tmp_b + (4 << 20),
                                 16 << 20),
                             40 << 20))             # safe on v7x's 64 MiB physical VMEM

        cost = pl.CostEstimate(
            flops=2 * n * in_p * out_p,
            transcendentals=4 * n,
            bytes_accessed=(x_p.size * x_p.dtype.itemsize
                            + wt_p.size * wt_p.dtype.itemsize
                            + n * out_p * jnp.dtype(x.dtype).itemsize))

        out = pl.pallas_call(
            kernel,
            out_shape=jax.ShapeDtypeStruct((n, out_p), x.dtype),
            grid_spec=pltpu.PrefetchScalarGridSpec(
                num_scalar_prefetch=0,
                grid=(grid_m,),
                in_specs=[
                    pl.BlockSpec((tm, in_p), lambda i: (i, 0)),      # x row tile
                    pl.BlockSpec((in_p, out_p), lambda i: (0, 0),
                                 pipeline_mode=pl.Buffered(1)),      # resident W^T, 1-buffered
                    pl.BlockSpec((1, out_p), lambda i: (0, 0)),      # hyperbolic bias
                ],
                out_specs=pl.BlockSpec((tm, out_p), lambda i: (i, 0)),
            ),
            compiler_params=pltpu.CompilerParams(
                dimension_semantics=("parallel",),
                vmem_limit_bytes=vmem_limit,
            ),
            cost_estimate=cost,
        )(x_p, wt_p, hb_p)

        out = out if out_p == out_f else out[:, :out_f]
        if nonlin is not None:                      # HyperbolicLinearFast.act_fn
            out = nonlin(out)
        return out

    return apply


def hyperbolic_linear_fast(x, weight, bias, *, c=1.0, nonlin=None, tile_m=256):
    """One-shot convenience wrapper (re-does the weight prep every call; prefer the factory)."""
    return make_hyperbolic_linear(weight, bias, c=c, nonlin=nonlin, tile_m=tile_m)(x)


def _reference(x, weight, bias, c):
    """Pure-JAX reference for the Mobius-linear forward (exact f32 divisions)."""
    sqrt_c = c ** 0.5
    maxnorm = (1.0 - BALL_EPS_F32) / sqrt_c

    def proj(y):
        nrm = jnp.maximum(jnp.linalg.norm(y, axis=-1, keepdims=True), MIN_NORM)
        return jnp.where(nrm > maxnorm, y / nrm * maxnorm, y)

    x = x.astype(jnp.float32)
    w = weight.astype(jnp.float32)
    b = bias.astype(jnp.float32).reshape(1, -1)

    x_norm = jnp.maximum(jnp.linalg.norm(x, axis=-1, keepdims=True), MIN_NORM)
    mx = x @ w.T
    mx_norm = jnp.maximum(jnp.linalg.norm(mx, axis=-1, keepdims=True), MIN_NORM)
    art = jnp.arctanh(jnp.clip(sqrt_c * x_norm, -1.0 + 1e-7, 1.0 - 1e-7))
    res = jnp.tanh(mx_norm / x_norm * art) * mx / (mx_norm * sqrt_c)
    res = jnp.where(jnp.all(mx == 0.0, axis=-1, keepdims=True), 0.0, res)
    res = proj(res)

    b_norm = jnp.maximum(jnp.linalg.norm(b, axis=-1, keepdims=True), MIN_NORM)
    hb = proj(jnp.tanh(sqrt_c * b_norm) * b / (sqrt_c * b_norm))

    x2 = jnp.sum(res * res, axis=-1, keepdims=True)
    y2 = jnp.sum(hb * hb, axis=-1, keepdims=True)
    xy = jnp.sum(res * hb, axis=-1, keepdims=True)
    num = (1.0 + 2.0 * c * xy + c * y2) * res + (1.0 - c * x2) * hb
    den = jnp.maximum(1.0 + 2.0 * c * xy + c * c * x2 * y2, MIN_NORM)
    return proj(num / den)


if __name__ == "__main__":
    # Small deterministic setup consistent with the module's forward:
    # N nodes on the Poincare ball, in_features -> out_features, curvature c.
    N, IN_F, OUT_F = 64, 32, 32
    C = 1.0

    key = jax.random.PRNGKey(0)
    kx, kw, kb = jax.random.split(key, 3)

    # Points strictly inside the ball of curvature c.
    x_raw = jax.random.normal(kx, (N, IN_F), dtype=jnp.float32)
    x = 0.3 * x_raw / (1.0 + jnp.linalg.norm(x_raw, axis=-1, keepdims=True))

    # Deterministic (xavier-uniform-like) parameter init; shapes from __init__:
    #   weight: (out_features, in_features), bias: (out_features,)
    limit = (6.0 / (IN_F + OUT_F)) ** 0.5
    weight = jax.random.uniform(kw, (OUT_F, IN_F), jnp.float32, -limit, limit)
    bias = 0.01 * jax.random.normal(kb, (OUT_F,), dtype=jnp.float32)

    layer = make_hyperbolic_linear(weight, bias, c=C, nonlin=None, tile_m=256)
    y = jax.block_until_ready(layer(x))

    assert y.shape == (N, OUT_F)
    assert bool(jnp.all(jnp.isfinite(y)))
    # Outputs must lie strictly inside the Poincare ball (norm < 1/sqrt(c)).
    assert bool(jnp.all(jnp.linalg.norm(y, axis=-1) < 1.0 / (C ** 0.5)))

    # Numerics vs. pure-JAX reference (loose tolerance: bf16 MXU operands and
    # approximate reciprocals on the per-row column work).
    y_ref = _reference(x, weight, bias, C)
    max_err = float(jnp.max(jnp.abs(y.astype(jnp.float32) - y_ref)))
    assert max_err < 2e-2, f"max abs error vs reference: {max_err}"

    print("KERNEL_OK")
</pallas_src>

<mosaic_0001>
module attributes {stable_mosaic.version = 11 : i64} {
  func.func @hyp_linear_kernel(%arg0: i32, %arg1: memref<64x128xf32, #tpu.memory_space<vmem>>, %arg2: memref<128x128xbf16, #tpu.memory_space<vmem>>, %arg3: memref<1x128xf32, #tpu.memory_space<vmem>>, %arg4: memref<64x128xf32, #tpu.memory_space<vmem>>) attributes {dimension_semantics = [#tpu.dimension_semantics<parallel>], iteration_bounds = array<i64: 1>, scalar_prefetch = 0 : i64, scratch_operands = 0 : i64, tpu.core_type = #tpu.core_type<tc>, window_params = [{transform_indices = @transform_0, window_bounds = array<i64: 64, 128>}, {pipeline_mode = #tpu.pipeline_mode<synchronous>, transform_indices = @transform_1, window_bounds = array<i64: 128, 128>}, {pipeline_mode = #tpu.pipeline_mode<synchronous>, transform_indices = @transform_2, window_bounds = array<i64: 1, 128>}, {transform_indices = @transform_3, window_bounds = array<i64: 64, 128>}]} {
    %c0 = arith.constant 0 : index
    %c0_0 = arith.constant 0 : index
    %0 = vector.load %arg1[%c0, %c0_0] : memref<64x128xf32, #tpu.memory_space<vmem>>, vector<64x128xf32>
    %c0_1 = arith.constant 0 : index
    %c0_2 = arith.constant 0 : index
    %1 = vector.load %arg2[%c0_1, %c0_2] : memref<128x128xbf16, #tpu.memory_space<vmem>>, vector<128x128xbf16>
    %c0_3 = arith.constant 0 : index
    %c0_4 = arith.constant 0 : index
    %2 = vector.load %arg3[%c0_3, %c0_4] : memref<1x128xf32, #tpu.memory_space<vmem>>, vector<1x128xf32>
    %3 = arith.truncf %0 : vector<64x128xf32> to vector<64x128xbf16>
    %cst = arith.constant dense<0.000000e+00> : vector<64x128xf32>
    %4 = tpu.matmul %3, %1, %cst {dimension_numbers = #tpu.dot_dimension_numbers<[1], [0], [0], [1], [0, 0, 1, 1], [], []>} : vector<64x128xbf16>, vector<128x128xbf16>, vector<64x128xf32> -> vector<64x128xf32>
    %5 = arith.mulf %0, %0 : vector<64x128xf32>
    %cst_5 = arith.constant dense<0.000000e+00> : vector<64xf32>
    %6 = vector.multi_reduction <add>, %5, %cst_5 [1] : vector<64x128xf32> to vector<64xf32>
    %7 = vector.shape_cast %6 : vector<64xf32> to vector<64x1xf32>
    %8 = math.sqrt %7 : vector<64x1xf32>
    %cst_6 = arith.constant 1.000000e-15 : f32
    %9 = vector.broadcast %cst_6 : f32 to vector<64x1xf32>
    %10 = arith.maximumf %8, %9 : vector<64x1xf32>
    %11 = arith.mulf %4, %4 : vector<64x128xf32>
    %cst_7 = arith.constant dense<0.000000e+00> : vector<64xf32>
    %12 = vector.multi_reduction <add>, %11, %cst_7 [1] : vector<64x128xf32> to vector<64xf32>
    %13 = vector.shape_cast %12 : vector<64xf32> to vector<64x1xf32>
    %14 = math.sqrt %13 : vector<64x1xf32>
    %cst_8 = arith.constant 1.000000e-15 : f32
    %15 = vector.broadcast %cst_8 : f32 to vector<64x1xf32>
    %16 = arith.maximumf %14, %15 : vector<64x1xf32>
    %cst_9 = arith.constant 0.000000e+00 : f32
    %17 = vector.broadcast %cst_9 : f32 to vector<64x1xf32>
    %18 = arith.cmpf oeq, %13, %17 : vector<64x1xf32>
    %19 = tpu.reciprocal %10 {approx = true} : vector<64x1xf32> -> vector<64x1xf32>
    %20 = arith.mulf %16, %19 : vector<64x1xf32>
    %cst_10 = arith.constant 1.000000e+00 : f32
    %21 = vector.broadcast %cst_10 : f32 to vector<64x1xf32>
    %22 = arith.mulf %21, %10 : vector<64x1xf32>
    %cst_11 = arith.constant -0.99999988 : f32
    %cst_12 = arith.constant 0.99999988 : f32
    %23 = vector.broadcast %cst_11 : f32 to vector<64x1xf32>
    %24 = arith.maximumf %23, %22 : vector<64x1xf32>
    %25 = vector.broadcast %cst_12 : f32 to vector<64x1xf32>
    %26 = arith.minimumf %25, %24 : vector<64x1xf32>
    %cst_13 = arith.constant 1.000000e+00 : f32
    %27 = vector.broadcast %cst_13 : f32 to vector<64x1xf32>
    %28 = arith.addf %27, %26 : vector<64x1xf32>
    %cst_14 = arith.constant 1.000000e+00 : f32
    %29 = vector.broadcast %cst_14 : f32 to vector<64x1xf32>
    %30 = arith.subf %29, %26 : vector<64x1xf32>
    %31 = arith.divf %28, %30 : vector<64x1xf32>
    %32 = math.log %31 : vector<64x1xf32>
    %cst_15 = arith.constant 5.000000e-01 : f32
    %33 = vector.broadcast %cst_15 : f32 to vector<64x1xf32>
    %34 = arith.mulf %33, %32 : vector<64x1xf32>
    %35 = arith.mulf %20, %34 : vector<64x1xf32>
    %36 = math.tanh %35 : vector<64x1xf32>
    %cst_16 = arith.constant 1.000000e+00 : f32
    %37 = vector.broadcast %cst_16 : f32 to vector<64x1xf32>
    %38 = arith.mulf %36, %37 : vector<64x1xf32>
    %39 = tpu.reciprocal %16 {approx = true} : vector<64x1xf32> -> vector<64x1xf32>
    %40 = arith.mulf %38, %39 : vector<64x1xf32>
    %cst_17 = arith.constant 1.000000e-15 : f32
    %41 = vector.broadcast %cst_17 : f32 to vector<64x1xf32>
    %42 = arith.maximumf %38, %41 : vector<64x1xf32>
    %43 = tpu.reciprocal %42 {approx = true} : vector<64x1xf32> -> vector<64x1xf32>
    %cst_18 = arith.constant 0.995999991 : f32
    %44 = vector.broadcast %cst_18 : f32 to vector<64x1xf32>
    %45 = arith.mulf %44, %43 : vector<64x1xf32>
    %cst_19 = arith.constant 1.000000e+00 : f32
    %46 = vector.broadcast %cst_19 : f32 to vector<64x1xf32>
    %47 = arith.minimumf %46, %45 : vector<64x1xf32>
    %48 = arith.mulf %40, %47 : vector<64x1xf32>
    %cst_20 = arith.constant 0.000000e+00 : f32
    %49 = vector.broadcast %cst_20 : f32 to vector<64x1xf32>
    %50 = arith.select %18, %49, %48 : vector<64x1xi1>, vector<64x1xf32>
    %cst_21 = arith.constant 0.995999991 : f32
    %51 = vector.broadcast %cst_21 : f32 to vector<64x1xf32>
    %52 = arith.minimumf %38, %51 : vector<64x1xf32>
    %cst_22 = arith.constant 0.000000e+00 : f32
    %53 = vector.broadcast %cst_22 : f32 to vector<64x1xf32>
    %54 = arith.select %18, %53, %52 : vector<64x1xi1>, vector<64x1xf32>
    %55 = arith.mulf %54, %54 : vector<64x1xf32>
    %56 = vector.broadcast %50 : vector<64x1xf32> to vector<64x128xf32>
    %57 = arith.mulf %56, %4 : vector<64x128xf32>
    %58 = vector.broadcast %2 : vector<1x128xf32> to vector<64x128xf32>
    %59 = arith.mulf %57, %58 : vector<64x128xf32>
    %cst_23 = arith.constant dense<0.000000e+00> : vector<64xf32>
    %60 = vector.multi_reduction <add>, %59, %cst_23 [1] : vector<64x128xf32> to vector<64xf32>
    %61 = vector.shape_cast %60 : vector<64xf32> to vector<64x1xf32>
    %cst_24 = arith.constant 2.000000e+00 : f32
    %62 = vector.broadcast %cst_24 : f32 to vector<64x1xf32>
    %63 = arith.mulf %62, %61 : vector<64x1xf32>
    %cst_25 = arith.constant 1.000000e+00 : f32
    %64 = vector.broadcast %cst_25 : f32 to vector<64x1xf32>
    %65 = arith.addf %64, %63 : vector<64x1xf32>
    %cst_26 = arith.constant 0.00308711501 : f32
    %66 = vector.broadcast %cst_26 : f32 to vector<64x1xf32>
    %67 = arith.addf %65, %66 : vector<64x1xf32>
    %68 = vector.broadcast %67 : vector<64x1xf32> to vector<64x128xf32>
    %69 = arith.mulf %68, %57 : vector<64x128xf32>
    %cst_27 = arith.constant 1.000000e+00 : f32
    %70 = vector.broadcast %cst_27 : f32 to vector<64x1xf32>
    %71 = arith.mulf %70, %55 : vector<64x1xf32>
    %cst_28 = arith.constant 1.000000e+00 : f32
    %72 = vector.broadcast %cst_28 : f32 to vector<64x1xf32>
    %73 = arith.subf %72, %71 : vector<64x1xf32>
    %74 = vector.broadcast %73 : vector<64x1xf32> to vector<64x128xf32>
    %75 = vector.broadcast %2 : vector<1x128xf32> to vector<64x128xf32>
    %76 = arith.mulf %74, %75 : vector<64x128xf32>
    %77 = arith.addf %69, %76 : vector<64x128xf32>
    %cst_29 = arith.constant 1.000000e+00 : f32
    %78 = vector.broadcast %cst_29 : f32 to vector<64x1xf32>
    %79 = arith.addf %78, %63 : vector<64x1xf32>
    %cst_30 = arith.constant 0.00308711501 : f32
    %80 = vector.broadcast %cst_30 : f32 to vector<64x1xf32>
    %81 = arith.mulf %80, %55 : vector<64x1xf32>
    %82 = arith.addf %79, %81 : vector<64x1xf32>
    %cst_31 = arith.constant 1.000000e-15 : f32
    %83 = vector.broadcast %cst_31 : f32 to vector<64x1xf32>
    %84 = arith.maximumf %82, %83 : vector<64x1xf32>
    %cst_32 = arith.constant 1.000000e+00 : f32
    %85 = vector.broadcast %cst_32 : f32 to vector<64x1xf32>
    %86 = arith.divf %85, %84 : vector<64x1xf32>
    %87 = vector.broadcast %86 : vector<64x1xf32> to vector<64x128xf32>
    %88 = arith.mulf %77, %87 : vector<64x128xf32>
    %89 = arith.mulf %88, %88 : vector<64x128xf32>
    %cst_33 = arith.constant dense<0.000000e+00> : vector<64xf32>
    %90 = vector.multi_reduction <add>, %89, %cst_33 [1] : vector<64x128xf32> to vector<64xf32>
    %91 = vector.shape_cast %90 : vector<64xf32> to vector<64x1xf32>
    %92 = math.sqrt %91 : vector<64x1xf32>
    %cst_34 = arith.constant 1.000000e-15 : f32
    %93 = vector.broadcast %cst_34 : f32 to vector<64x1xf32>
    %94 = arith.maximumf %92, %93 : vector<64x1xf32>
    %cst_35 = arith.constant 0.995999991 : f32
    %95 = vector.broadcast %cst_35 : f32 to vector<64x1xf32>
    %96 = arith.divf %95, %94 : vector<64x1xf32>
    %cst_36 = arith.constant 0.995999991 : f32
    %97 = vector.broadcast %cst_36 : f32 to vector<64x1xf32>
    %98 = arith.cmpf ogt, %94, %97 : vector<64x1xf32>
    %99 = vector.broadcast %96 : vector<64x1xf32> to vector<64x128xf32>
    %100 = arith.mulf %88, %99 : vector<64x128xf32>
    %101 = vector.shape_cast %98 : vector<64x1xi1> to vector<64x1xi1>
    %102 = vector.broadcast %101 : vector<64x1xi1> to vector<64x128xi1>
    %103 = arith.select %102, %100, %88 : vector<64x128xi1>, vector<64x128xf32>
    %c0_37 = arith.constant 0 : index
    %c0_38 = arith.constant 0 : index
    %104 = vector.load %arg4[%c0_37, %c0_38] : memref<64x128xf32, #tpu.memory_space<vmem>>, vector<64x128xf32>
    tpu.vector_store %arg4[%c0_37, %c0_38], %103 {strides = array<i32>} : memref<64x128xf32, #tpu.memory_space<vmem>>, vector<64x128xf32>,
    return
  }
  func.func @transform_0(%arg0: i32) -> (i32, i32) {
    %c0_i32 = arith.constant 0 : i32
    %c0_i32_0 = arith.constant 0 : i32
    return %arg0, %c0_i32 : i32, i32
  }
  func.func @transform_1(%arg0: i32) -> (i32, i32) {
    %c0_i32 = arith.constant 0 : i32
    %c0_i32_0 = arith.constant 0 : i32
    %c0_i32_1 = arith.constant 0 : i32
    return %c0_i32, %c0_i32_0 : i32, i32
  }
  func.func @transform_2(%arg0: i32) -> (i32, i32) {
    %c0_i32 = arith.constant 0 : i32
    %c0_i32_0 = arith.constant 0 : i32
    %c0_i32_1 = arith.constant 0 : i32
    return %c0_i32, %c0_i32_0 : i32, i32
  }
  func.func @transform_3(%arg0: i32) -> (i32, i32) {
    %c0_i32 = arith.constant 0 : i32
    %c0_i32_0 = arith.constant 0 : i32
    return %arg0, %c0_i32 : i32, i32
  }
}

</mosaic_0001>

<llo_original>
// kernel: apply.1
$region0: #{apply.1}
  #allocation0 [shape = 'u32[]', space=smem, size = 0x4, offset = 0x4, fixed_abs, tag = 'smem constant byte address 0x4 - core index']
  #allocation1 [shape = 'u32[144,128]{1,0:T(1,128)}', space=vmem, size = 0x12000, scoped, tag = 'internal scratch']
  %s0 = inlined_call_operand.vmem [shape: f32[64,128], index: 0, kind: input, shape index: {}]
  %s1 = inlined_call_operand.vmem [shape: bf16[128,128], index: 1, kind: input, shape index: {}]
  %s2 = inlined_call_operand.vmem [shape: f32[1,128], index: 2, kind: input, shape index: {}]
  %s3 = inlined_call_operand.vmem [shape: f32[64,128], index: 3, kind: output, shape index: {}]
  %s4 = sld [smem:[#allocation0]]
  $region22: #{apply.1} parent=0
    _
  %s6 = ssub.s32 1, %s4
  %s7 = scalar_select 0, %s6, %s4
  // Predicated region
  $region2: #{apply.1} parent=0 // pred_check
    _
  $region3: #{apply.1} parent=0 // pred_check_branch
    %9 = sbr.rel (0) target = $region5
  $region4: #{apply.1} parent=0 // pred_region
    _
  $region5: #{apply.1} parent=0 // pred_fallthru
    _
  // Predicated region
  $region6: #{apply.1} parent=0 // pred_check
    _
  $region7: #{apply.1} parent=0 // pred_check_branch
    %11 = sbr.rel (0) target = $region9
  $region8: #{apply.1} parent=0 // pred_region
    _
  $region9: #{apply.1} parent=0 // pred_fallthru
    _
  // Predicated region
  $region10: #{apply.1} parent=0 // pred_check
    _
  $region11: #{apply.1} parent=0 // pred_check_branch
    %13 = sbr.rel (0) target = $region13
  $region12: #{apply.1} parent=0 // pred_region
    _
  $region13: #{apply.1} parent=0 // pred_fallthru
    _
  %v15 = vld [vmem:[%s0] sm:$0xff]
  %v16 = vld [vmem:[%s0 + $0x8] sm:$0xff]
  %v17 = vld [vmem:[%s0 + $0x10] sm:$0xff]
  %v18 = vld [vmem:[%s0 + $0x18] sm:$0xff]
  %v19 = vld [vmem:[%s0 + $0x20] sm:$0xff]
  %v20 = vld [vmem:[%s0 + $0x28] sm:$0xff]
  %v21 = vld [vmem:[%s0 + $0x30] sm:$0xff]
  %v22 = vld [vmem:[%s0 + $0x38] sm:$0xff]
  %v23 = vld [vmem:[%s1] sm:$0xf]
  %v24 = vld [vmem:[%s1 + $0x4] sm:$0xf]
  %v25 = vld [vmem:[%s1 + $0x8] sm:$0xf]
  %v26 = vld [vmem:[%s1 + $0xc] sm:$0xf]
  %v27 = vld [vmem:[%s1 + $0x10] sm:$0xf]
  %v28 = vld [vmem:[%s1 + $0x14] sm:$0xf]
  %v29 = vld [vmem:[%s1 + $0x18] sm:$0xf]
  %v30 = vld [vmem:[%s1 + $0x1c] sm:$0xf]
  %v31 = vld [vmem:[%s1 + $0x20] sm:$0xf]
  %v32 = vld [vmem:[%s1 + $0x24] sm:$0xf]
  %v33 = vld [vmem:[%s1 + $0x28] sm:$0xf]
  %v34 = vld [vmem:[%s1 + $0x2c] sm:$0xf]
  %v35 = vld [vmem:[%s1 + $0x30] sm:$0xf]
  %v36 = vld [vmem:[%s1 + $0x34] sm:$0xf]
  %v37 = vld [vmem:[%s1 + $0x38] sm:$0xf]
  %v38 = vld [vmem:[%s1 + $0x3c] sm:$0xf]
  %v39 = vld [vmem:[%s2] sm:$0x1]
  %v40 = vpack.c.bf16 %v16, %v15
  %v41 = vpack.c.bf16 %v18, %v17
  %v42 = vpack.c.bf16 %v20, %v19
  %v43 = vpack.c.bf16 %v22, %v21
  %v60 = vunpack.c.l.b16 %v23
  %v61 = vunpack.c.l.b16 %v24
  %v62 = vunpack.c.l.b16 %v25
  %v63 = vunpack.c.l.b16 %v26
  %v64 = vunpack.c.l.b16 %v27
  %v65 = vunpack.c.l.b16 %v28
  %v66 = vunpack.c.l.b16 %v29
  %v67 = vunpack.c.l.b16 %v30
  %v68 = vunpack.c.l.b16 %v31
  %v69 = vunpack.c.l.b16 %v32
  %v70 = vunpack.c.l.b16 %v33
  %v71 = vunpack.c.l.b16 %v34
  %v72 = vunpack.c.l.b16 %v35
  %v73 = vunpack.c.l.b16 %v36
  %v74 = vunpack.c.l.b16 %v37
  %v75 = vunpack.c.l.b16 %v38
  %v76 = vpack.c.b16 %v61, %v60
  %v77 = vpack.c.b16 %v63, %v62
  %v78 = vpack.c.b16 %v65, %v64
  %v79 = vpack.c.b16 %v67, %v66
  %v80 = vpack.c.b16 %v69, %v68
  %v81 = vpack.c.b16 %v71, %v70
  %v82 = vpack.c.b16 %v73, %v72
  %v83 = vpack.c.b16 %v75, %v74
  %92 = vmatprep.subr.bf16.mxu0 0
  %93 = vmatpush1.bf16.msra.mxu0 %v83
  %94 = vmatprep.subr.bf16.mxu0 0
  %95 = vmatpush1.bf16.msra.mxu0 %v82
  %96 = vmatprep.subr.bf16.mxu0 0
  %97 = vmatpush1.bf16.msra.mxu0 %v81
  %98 = vmatprep.subr.bf16.mxu0 0
  %99 = vmatpush1.bf16.msra.mxu0 %v80
  %100 = vmatprep.subr.bf16.mxu0 0
  %101 = vmatpush1.bf16.msra.mxu0 %v79
  %102 = vmatprep.subr.bf16.mxu0 0
  %103 = vmatpush1.bf16.msra.mxu0 %v78
  %104 = vmatprep.subr.bf16.mxu0 0
  %105 = vmatpush1.bf16.msra.mxu0 %v77
  %106 = vmatprep.subr.bf16.mxu0 0
  %107 = vmatpush1.bf16.msra.mxu0 %v76
  %108 = vmatprep.subr.bf16.mxu0 0
  %109 = vmatpush2.bf16.msra.mxu0 0
  %110 = vmatprep.subr.bf16.mxu0 0
  %111 = vmatpush2.bf16.msra.mxu0 0
  %112 = vmatprep.subr.bf16.mxu0 0
  %113 = vmatpush2.bf16.msra.mxu0 0
  %114 = vmatprep.subr.bf16.mxu0 0
  %115 = vmatpush2.bf16.msra.mxu0 0
  %116 = vmatprep.subr.bf16.mxu0 0
  %117 = vmatpush2.bf16.msra.mxu0 0
  %118 = vmatprep.subr.bf16.mxu0 0
  %119 = vmatpush2.bf16.msra.mxu0 0
  %120 = vmatprep.subr.bf16.mxu0 0
  %121 = vmatpush2.bf16.msra.mxu0 0
  %122 = vmatprep.subr.bf16.mxu0 0
  %123 = vmatpush2.bf16.msra.mxu0 0
  %124 = vmatprep.mubr.bf16.mxu0 0
  %125 = vmatmul.mubr.bf16.gmra.mxu0 %v40
  %v126 = vpop.f32.mrf.mxu0
  %v127 = vadd.f32 0.0, %v126
  %v128 = vpop.f32.mrf.mxu0
  %v129 = vpop.f32.mrf.mxu0
  %v130 = vadd.f32 0.0, %v129
  %v131 = vpop.f32.mrf.mxu0
  %132 = vmatprep.mubr.bf16.mxu0 0
  %133 = vmatmul.mubr.bf16.gmra.mxu0 %v41
  %v134 = vpop.f32.mrf.mxu0
  %v135 = vadd.f32 0.0, %v134
  %v136 = vpop.f32.mrf.mxu0
  %v137 = vpop.f32.mrf.mxu0
  %v138 = vadd.f32 0.0, %v137
  %v139 = vpop.f32.mrf.mxu0
  %140 = vmatprep.mubr.bf16.mxu0 0
  %141 = vmatmul.mubr.bf16.gmra.mxu0 %v42
  %v142 = vpop.f32.mrf.mxu0
  %v143 = vadd.f32 0.0, %v142
  %v144 = vpop.f32.mrf.mxu0
  %v145 = vpop.f32.mrf.mxu0
  %v146 = vadd.f32 0.0, %v145
  %v147 = vpop.f32.mrf.mxu0
  %148 = vmatprep.mubr.bf16.mxu0 0
  %149 = vmatmul.mubr.bf16.gmra.mxu0 %v43
  %v150 = vpop.f32.mrf.mxu0
  %v151 = vadd.f32 0.0, %v150
  %v152 = vpop.f32.mrf.mxu0
  %v153 = vpop.f32.mrf.mxu0
  %v154 = vadd.f32 0.0, %v153
  %v155 = vpop.f32.mrf.mxu0
  %156 = vdwg.mxu0
  %v157 = vmul.f32 %v15, %v15
  %v158 = vmul.f32 %v16, %v16
  %v159 = vmul.f32 %v17, %v17
  %v160 = vmul.f32 %v18, %v18
  %v161 = vmul.f32 %v19, %v19
  %v162 = vmul.f32 %v20, %v20
  %v163 = vmul.f32 %v21, %v21
  %v164 = vmul.f32 %v22, %v22
  %165 = vadd.xlane.f32.xlu0 %v157
  %v166 = vpop.xlane.xlu0 %165
  %167 = vadd.xlane.f32.xlu0 %v158
  %v168 = vpop.xlane.xlu0 %167
  %169 = vadd.xlane.f32.xlu0 %v159
  %v170 = vpop.xlane.xlu0 %169
  %171 = vadd.xlane.f32.xlu0 %v160
  %v172 = vpop.xlane.xlu0 %171
  %173 = vadd.xlane.f32.xlu0 %v161
  %v174 = vpop.xlane.xlu0 %173
  %175 = vadd.xlane.f32.xlu0 %v162
  %v176 = vpop.xlane.xlu0 %175
  %177 = vadd.xlane.f32.xlu0 %v163
  %v178 = vpop.xlane.xlu0 %177
  %179 = vadd.xlane.f32.xlu0 %v164
  %v180 = vpop.xlane.xlu0 %179
  %v181 = vrsqrt.pop %v166
  %v182 = vmul.f32 %v166, %v181
  %vm183 = vcmp.eq.f32.partialorder %v166, inf
  %v184 = vsel %vm183, %v166, %v182
  %vm185 = vcmp.eq.f32.partialorder %v166, 0.0
  %v186 = vand.u32 %v166, 2147483648
  %v187 = vsel %vm185, %v186, %v184
  %v188 = vrsqrt.pop %v168
  %v189 = vmul.f32 %v168, %v188
  %vm190 = vcmp.eq.f32.partialorder %v168, inf
  %v191 = vsel %vm190, %v168, %v189
  %vm192 = vcmp.eq.f32.partialorder %v168, 0.0
  %v193 = vand.u32 %v168, 2147483648
  %v194 = vsel %vm192, %v193, %v191
  %v195 = vrsqrt.pop %v170
  %v196 = vmul.f32 %v170, %v195
  %vm197 = vcmp.eq.f32.partialorder %v170, inf
  %v198 = vsel %vm197, %v170, %v196
  %vm199 = vcmp.eq.f32.partialorder %v170, 0.0
  %v200 = vand.u32 %v170, 2147483648
  %v201 = vsel %vm199, %v200, %v198
  %v202 = vrsqrt.pop %v172
  %v203 = vmul.f32 %v172, %v202
  %vm204 = vcmp.eq.f32.partialorder %v172, inf
  %v205 = vsel %vm204, %v172, %v203
  %vm206 = vcmp.eq.f32.partialorder %v172, 0.0
  %v207 = vand.u32 %v172, 2147483648
  %v208 = vsel %vm206, %v207, %v205
  %v209 = vrsqrt.pop %v174
  %v210 = vmul.f32 %v174, %v209
  %vm211 = vcmp.eq.f32.partialorder %v174, inf
  %v212 = vsel %vm211, %v174, %v210
  %vm213 = vcmp.eq.f32.partialorder %v174, 0.0
  %v214 = vand.u32 %v174, 2147483648
  %v215 = vsel %vm213, %v214, %v212
  %v216 = vrsqrt.pop %v176
  %v217 = vmul.f32 %v176, %v216
  %vm218 = vcmp.eq.f32.partialorder %v176, inf
  %v219 = vsel %vm218, %v176, %v217
  %vm220 = vcmp.eq.f32.partialorder %v176, 0.0
  %v221 = vand.u32 %v176, 2147483648
  %v222 = vsel %vm220, %v221, %v219
  %v223 = vrsqrt.pop %v178
  %v224 = vmul.f32 %v178, %v223
  %vm225 = vcmp.eq.f32.partialorder %v178, inf
  %v226 = vsel %vm225, %v178, %v224
  %vm227 = vcmp.eq.f32.partialorder %v178, 0.0
  %v228 = vand.u32 %v178, 2147483648
  %v229 = vsel %vm227, %v228, %v226
  %v230 = vrsqrt.pop %v180
  %v231 = vmul.f32 %v180, %v230
  %vm232 = vcmp.eq.f32.partialorder %v180, inf
  %v233 = vsel %vm232, %v180, %v231
  %vm234 = vcmp.eq.f32.partialorder %v180, 0.0
  %v235 = vand.u32 %v180, 2147483648
  %v236 = vsel %vm234, %v235, %v233
  %v237 = vmax.f32 %v187, 1e-15
  %v238 = vmax.f32 %v194, 1e-15
  %v239 = vmax.f32 %v201, 1e-15
  %v240 = vmax.f32 %v208, 1e-15
  %v241 = vmax.f32 %v215, 1e-15
  %v242 = vmax.f32 %v222, 1e-15
  %v243 = vmax.f32 %v229, 1e-15
  %v244 = vmax.f32 %v236, 1e-15
  %v245 = vmul.f32 %v127, %v127
  %v246 = vmul.f32 %v130, %v130
  %v247 = vmul.f32 %v135, %v135
  %v248 = vmul.f32 %v138, %v138
  %v249 = vmul.f32 %v143, %v143
  %v250 = vmul.f32 %v146, %v146
  %v251 = vmul.f32 %v151, %v151
  %v252 = vmul.f32 %v154, %v154
  %253 = vadd.xlane.f32.xlu0 %v245
  %v254 = vpop.xlane.xlu0 %253
  %255 = vadd.xlane.f32.xlu0 %v246
  %v256 = vpop.xlane.xlu0 %255
  %257 = vadd.xlane.f32.xlu0 %v247
  %v258 = vpop.xlane.xlu0 %257
  %259 = vadd.xlane.f32.xlu0 %v248
  %v260 = vpop.xlane.xlu0 %259
  %261 = vadd.xlane.f32.xlu0 %v249
  %v262 = vpop.xlane.xlu0 %261
  %263 = vadd.xlane.f32.xlu0 %v250
  %v264 = vpop.xlane.xlu0 %263
  %265 = vadd.xlane.f32.xlu0 %v251
  %v266 = vpop.xlane.xlu0 %265
  %267 = vadd.xlane.f32.xlu0 %v252
  %v268 = vpop.xlane.xlu0 %267
  %v269 = vrsqrt.pop %v254
  %v270 = vmul.f32 %v254, %v269
  %vm271 = vcmp.eq.f32.partialorder %v254, inf
  %v272 = vsel %vm271, %v254, %v270
  %vm273 = vcmp.eq.f32.partialorder %v254, 0.0
  %v274 = vand.u32 %v254, 2147483648
  %v275 = vsel %vm273, %v274, %v272
  %v276 = vrsqrt.pop %v256
  %v277 = vmul.f32 %v256, %v276
  %vm278 = vcmp.eq.f32.partialorder %v256, inf
  %v279 = vsel %vm278, %v256, %v277
  %vm280 = vcmp.eq.f32.partialorder %v256, 0.0
  %v281 = vand.u32 %v256, 2147483648
  %v282 = vsel %vm280, %v281, %v279
  %v283 = vrsqrt.pop %v258
  %v284 = vmul.f32 %v258, %v283
  %vm285 = vcmp.eq.f32.partialorder %v258, inf
  %v286 = vsel %vm285, %v258, %v284
  %vm287 = vcmp.eq.f32.partialorder %v258, 0.0
  %v288 = vand.u32 %v258, 2147483648
  %v289 = vsel %vm287, %v288, %v286
  %v290 = vrsqrt.pop %v260
  %v291 = vmul.f32 %v260, %v290
  %vm292 = vcmp.eq.f32.partialorder %v260, inf
  %v293 = vsel %vm292, %v260, %v291
  %vm294 = vcmp.eq.f32.partialorder %v260, 0.0
  %v295 = vand.u32 %v260, 2147483648
  %v296 = vsel %vm294, %v295, %v293
  %v297 = vrsqrt.pop %v262
  %v298 = vmul.f32 %v262, %v297
  %vm299 = vcmp.eq.f32.partialorder %v262, inf
  %v300 = vsel %vm299, %v262, %v298
  %vm301 = vcmp.eq.f32.partialorder %v262, 0.0
  %v302 = vand.u32 %v262, 2147483648
  %v303 = vsel %vm301, %v302, %v300
  %v304 = vrsqrt.pop %v264
  %v305 = vmul.f32 %v264, %v304
  %vm306 = vcmp.eq.f32.partialorder %v264, inf
  %v307 = vsel %vm306, %v264, %v305
  %vm308 = vcmp.eq.f32.partialorder %v264, 0.0
  %v309 = vand.u32 %v264, 2147483648
  %v310 = vsel %vm308, %v309, %v307
  %v311 = vrsqrt.pop %v266
  %v312 = vmul.f32 %v266, %v311
  %vm313 = vcmp.eq.f32.partialorder %v266, inf
  %v314 = vsel %vm313, %v266, %v312
  %vm315 = vcmp.eq.f32.partialorder %v266, 0.0
  %v316 = vand.u32 %v266, 2147483648
  %v317 = vsel %vm315, %v316, %v314
  %v318 = vrsqrt.pop %v268
  %v319 = vmul.f32 %v268, %v318
  %vm320 = vcmp.eq.f32.partialorder %v268, inf
  %v321 = vsel %vm320, %v268, %v319
  %vm322 = vcmp.eq.f32.partialorder %v268, 0.0
  %v323 = vand.u32 %v268, 2147483648
  %v324 = vsel %vm322, %v323, %v321
  %v325 = vmax.f32 %v275, 1e-15
  %v326 = vmax.f32 %v282, 1e-15
  %v327 = vmax.f32 %v289, 1e-15
  %v328 = vmax.f32 %v296, 1e-15
  %v329 = vmax.f32 %v303, 1e-15
  %v330 = vmax.f32 %v310, 1e-15
  %v331 = vmax.f32 %v317, 1e-15
  %v332 = vmax.f32 %v324, 1e-15
  %vm333 = vcmp.eq.f32.partialorder %v254, 0.0
  %vm334 = vcmp.eq.f32.partialorder %v256, 0.0
  %vm335 = vcmp.eq.f32.partialorder %v258, 0.0
  %vm336 = vcmp.eq.f32.partialorder %v260, 0.0
  %vm337 = vcmp.eq.f32.partialorder %v262, 0.0
  %vm338 = vcmp.eq.f32.partialorder %v264, 0.0
  %vm339 = vcmp.eq.f32.partialorder %v266, 0.0
  %vm340 = vcmp.eq.f32.partialorder %v268, 0.0
  %v341 = vrcp.pop %v237
  %v342 = vrcp.pop %v238
  %v343 = vrcp.pop %v239
  %v344 = vrcp.pop %v240
  %v345 = vrcp.pop %v241
  %v346 = vrcp.pop %v242
  %v347 = vrcp.pop %v243
  %v348 = vrcp.pop %v244
  %v349 = vmul.f32 %v325, %v341
  %v350 = vmul.f32 %v326, %v342
  %v351 = vmul.f32 %v327, %v343
  %v352 = vmul.f32 %v328, %v344
  %v353 = vmul.f32 %v329, %v345
  %v354 = vmul.f32 %v330, %v346
  %v355 = vmul.f32 %v331, %v347
  %v356 = vmul.f32 %v332, %v348
  %v357 = vmax.f32 %v237, -0.9999999
  %v358 = vmax.f32 %v238, -0.9999999
  %v359 = vmax.f32 %v239, -0.9999999
  %v360 = vmax.f32 %v240, -0.9999999
  %v361 = vmax.f32 %v241, -0.9999999
  %v362 = vmax.f32 %v242, -0.9999999
  %v363 = vmax.f32 %v243, -0.9999999
  %v364 = vmax.f32 %v244, -0.9999999
  %v365 = vmin.f32 %v357, 0.9999999
  %v366 = vmin.f32 %v358, 0.9999999
  %v367 = vmin.f32 %v359, 0.9999999
  %v368 = vmin.f32 %v360, 0.9999999
  %v369 = vmin.f32 %v361, 0.9999999
  %v370 = vmin.f32 %v362, 0.9999999
  %v371 = vmin.f32 %v363, 0.9999999
  %v372 = vmin.f32 %v364, 0.9999999
  %v373 = vadd.f32 %v365, 1.0
  %v374 = vadd.f32 %v366, 1.0
  %v375 = vadd.f32 %v367, 1.0
  %v376 = vadd.f32 %v368, 1.0
  %v377 = vadd.f32 %v369, 1.0
  %v378 = vadd.f32 %v370, 1.0
  %v379 = vadd.f32 %v371, 1.0
  %v380 = vadd.f32 %v372, 1.0
  %v381 = vsub.f32 1.0, %v365
  %v382 = vsub.f32 1.0, %v366
  %v383 = vsub.f32 1.0, %v367
  %v384 = vsub.f32 1.0, %v368
  %v385 = vsub.f32 1.0, %v369
  %v386 = vsub.f32 1.0, %v370
  %v387 = vsub.f32 1.0, %v371
  %v388 = vsub.f32 1.0, %v372
  %v389 = vrcp.pop %v381
  %v390 = vmul.f32 %v373, %v389
  %v391 = vrcp.pop %v382
  %v392 = vmul.f32 %v374, %v391
  %v393 = vrcp.pop %v383
  %v394 = vmul.f32 %v375, %v393
  %v395 = vrcp.pop %v384
  %v396 = vmul.f32 %v376, %v395
  %v397 = vrcp.pop %v385
  %v398 = vmul.f32 %v377, %v397
  %v399 = vrcp.pop %v386
  %v400 = vmul.f32 %v378, %v399
  %v401 = vrcp.pop %v387
  %v402 = vmul.f32 %v379, %v401
  %v403 = vrcp.pop %v388
  %v404 = vmul.f32 %v380, %v403
  %v405 = vlog2.pop %v390
  %v406 = vmul.f32 %v405, 0.6931472
  %v407 = vlog2.pop %v392
  %v408 = vmul.f32 %v407, 0.6931472
  %v409 = vlog2.pop %v394
  %v410 = vmul.f32 %v409, 0.6931472
  %v411 = vlog2.pop %v396
  %v412 = vmul.f32 %v411, 0.6931472
  %v413 = vlog2.pop %v398
  %v414 = vmul.f32 %v413, 0.6931472
  %v415 = vlog2.pop %v400
  %v416 = vmul.f32 %v415, 0.6931472
  %v417 = vlog2.pop %v402
  %v418 = vmul.f32 %v417, 0.6931472
  %v419 = vlog2.pop %v404
  %v420 = vmul.f32 %v419, 0.6931472
  %v421 = vmul.f32 %v406, 0.5
  %v422 = vmul.f32 %v408, 0.5
  %v423 = vmul.f32 %v410, 0.5
  %v424 = vmul.f32 %v412, 0.5
  %v425 = vmul.f32 %v414, 0.5
  %v426 = vmul.f32 %v416, 0.5
  %v427 = vmul.f32 %v418, 0.5
  %v428 = vmul.f32 %v420, 0.5
  %v429 = vmul.f32 %v349, %v421
  %v430 = vmul.f32 %v350, %v422
  %v431 = vmul.f32 %v351, %v423
  %v432 = vmul.f32 %v352, %v424
  %v433 = vmul.f32 %v353, %v425
  %v434 = vmul.f32 %v354, %v426
  %v435 = vmul.f32 %v355, %v427
  %v436 = vmul.f32 %v356, %v428
  %v437 = vtanh.pop %v429
  %v438 = vtanh.pop %v430
  %v439 = vtanh.pop %v431
  %v440 = vtanh.pop %v432
  %v441 = vtanh.pop %v433
  %v442 = vtanh.pop %v434
  %v443 = vtanh.pop %v435
  %v444 = vtanh.pop %v436
  %v445 = vrcp.pop %v325
  %v446 = vrcp.pop %v326
  %v447 = vrcp.pop %v327
  %v448 = vrcp.pop %v328
  %v449 = vrcp.pop %v329
  %v450 = vrcp.pop %v330
  %v451 = vrcp.pop %v331
  %v452 = vrcp.pop %v332
  %v453 = vmul.f32 %v437, %v445
  %v454 = vmul.f32 %v438, %v446
  %v455 = vmul.f32 %v439, %v447
  %v456 = vmul.f32 %v440, %v448
  %v457 = vmul.f32 %v441, %v449
  %v458 = vmul.f32 %v442, %v450
  %v459 = vmul.f32 %v443, %v451
  %v460 = vmul.f32 %v444, %v452
  %v461 = vmax.f32 %v437, 1e-15
  %v462 = vmax.f32 %v438, 1e-15
  %v463 = vmax.f32 %v439, 1e-15
  %v464 = vmax.f32 %v440, 1e-15
  %v465 = vmax.f32 %v441, 1e-15
  %v466 = vmax.f32 %v442, 1e-15
  %v467 = vmax.f32 %v443, 1e-15
  %v468 = vmax.f32 %v444, 1e-15
  %v469 = vrcp.pop %v461
  %v470 = vrcp.pop %v462
  %v471 = vrcp.pop %v463
  %v472 = vrcp.pop %v464
  %v473 = vrcp.pop %v465
  %v474 = vrcp.pop %v466
  %v475 = vrcp.pop %v467
  %v476 = vrcp.pop %v468
  %v477 = vmul.f32 %v469, 0.996
  %v478 = vmul.f32 %v470, 0.996
  %v479 = vmul.f32 %v471, 0.996
  %v480 = vmul.f32 %v472, 0.996
  %v481 = vmul.f32 %v473, 0.996
  %v482 = vmul.f32 %v474, 0.996
  %v483 = vmul.f32 %v475, 0.996
  %v484 = vmul.f32 %v476, 0.996
  %v485 = vmin.f32 %v477, 1.0
  %v486 = vmin.f32 %v478, 1.0
  %v487 = vmin.f32 %v479, 1.0
  %v488 = vmin.f32 %v480, 1.0
  %v489 = vmin.f32 %v481, 1.0
  %v490 = vmin.f32 %v482, 1.0
  %v491 = vmin.f32 %v483, 1.0
  %v492 = vmin.f32 %v484, 1.0
  %v493 = vmul.f32 %v453, %v485
  %v494 = vmul.f32 %v454, %v486
  %v495 = vmul.f32 %v455, %v487
  %v496 = vmul.f32 %v456, %v488
  %v497 = vmul.f32 %v457, %v489
  %v498 = vmul.f32 %v458, %v490
  %v499 = vmul.f32 %v459, %v491
  %v500 = vmul.f32 %v460, %v492
  %v501 = vsel %vm333, 0.0, %v493
  %v502 = vsel %vm334, 0.0, %v494
  %v503 = vsel %vm335, 0.0, %v495
  %v504 = vsel %vm336, 0.0, %v496
  %v505 = vsel %vm337, 0.0, %v497
  %v506 = vsel %vm338, 0.0, %v498
  %v507 = vsel %vm339, 0.0, %v499
  %v508 = vsel %vm340, 0.0, %v500
  %v509 = vmin.f32 %v437, 0.996
  %v510 = vmin.f32 %v438, 0.996
  %v511 = vmin.f32 %v439, 0.996
  %v512 = vmin.f32 %v440, 0.996
  %v513 = vmin.f32 %v441, 0.996
  %v514 = vmin.f32 %v442, 0.996
  %v515 = vmin.f32 %v443, 0.996
  %v516 = vmin.f32 %v444, 0.996
  %v517 = vsel %vm333, 0.0, %v509
  %v518 = vsel %vm334, 0.0, %v510
  %v519 = vsel %vm335, 0.0, %v511
  %v520 = vsel %vm336, 0.0, %v512
  %v521 = vsel %vm337, 0.0, %v513
  %v522 = vsel %vm338, 0.0, %v514
  %v523 = vsel %vm339, 0.0, %v515
  %v524 = vsel %vm340, 0.0, %v516
  %v525 = vmul.f32 %v517, %v517
  %v526 = vmul.f32 %v518, %v518
  %v527 = vmul.f32 %v519, %v519
  %v528 = vmul.f32 %v520, %v520
  %v529 = vmul.f32 %v521, %v521
  %v530 = vmul.f32 %v522, %v522
  %v531 = vmul.f32 %v523, %v523
  %v532 = vmul.f32 %v524, %v524
  %v533 = vmul.f32 %v501, %v127
  %v534 = vmul.f32 %v502, %v130
  %v535 = vmul.f32 %v503, %v135
  %v536 = vmul.f32 %v504, %v138
  %v537 = vmul.f32 %v505, %v143
  %v538 = vmul.f32 %v506, %v146
  %v539 = vmul.f32 %v507, %v151
  %v540 = vmul.f32 %v508, %v154
  %v542 = vlaneseq
  %v543 = vshrl.u32 %v542, 7
  %v544 = vsub.s32 0, %v543
  %v545 = vrot.slane %v39, %v544
  %v547 = vmul.f32 %v533, %v545
  %v548 = vmul.f32 %v534, %v545
  %v549 = vmul.f32 %v535, %v545
  %v550 = vmul.f32 %v536, %v545
  %v551 = vmul.f32 %v537, %v545
  %v552 = vmul.f32 %v538, %v545
  %v553 = vmul.f32 %v539, %v545
  %v554 = vmul.f32 %v540, %v545
  %555 = vadd.xlane.f32.xlu0 %v547
  %v556 = vpop.xlane.xlu0 %555
  %557 = vadd.xlane.f32.xlu0 %v548
  %v558 = vpop.xlane.xlu0 %557
  %559 = vadd.xlane.f32.xlu0 %v549
  %v560 = vpop.xlane.xlu0 %559
  %561 = vadd.xlane.f32.xlu0 %v550
  %v562 = vpop.xlane.xlu0 %561
  %563 = vadd.xlane.f32.xlu0 %v551
  %v564 = vpop.xlane.xlu0 %563
  %565 = vadd.xlane.f32.xlu0 %v552
  %v566 = vpop.xlane.xlu0 %565
  %567 = vadd.xlane.f32.xlu0 %v553
  %v568 = vpop.xlane.xlu0 %567
  %569 = vadd.xlane.f32.xlu0 %v554
  %v570 = vpop.xlane.xlu0 %569
  %v571 = vmul.f32 %v556, 2.0
  %v572 = vmul.f32 %v558, 2.0
  %v573 = vmul.f32 %v560, 2.0
  %v574 = vmul.f32 %v562, 2.0
  %v575 = vmul.f32 %v564, 2.0
  %v576 = vmul.f32 %v566, 2.0
  %v577 = vmul.f32 %v568, 2.0
  %v578 = vmul.f32 %v570, 2.0
  %v579 = vadd.f32 %v571, 1.0
  %v580 = vadd.f32 %v572, 1.0
  %v581 = vadd.f32 %v573, 1.0
  %v582 = vadd.f32 %v574, 1.0
  %v583 = vadd.f32 %v575, 1.0
  %v584 = vadd.f32 %v576, 1.0
  %v585 = vadd.f32 %v577, 1.0
  %v586 = vadd.f32 %v578, 1.0
  %v587 = vadd.f32 %v579, 0.003087115
  %v588 = vadd.f32 %v580, 0.003087115
  %v589 = vadd.f32 %v581, 0.003087115
  %v590 = vadd.f32 %v582, 0.003087115
  %v591 = vadd.f32 %v583, 0.003087115
  %v592 = vadd.f32 %v584, 0.003087115
  %v593 = vadd.f32 %v585, 0.003087115
  %v594 = vadd.f32 %v586, 0.003087115
  %v595 = vmul.f32 %v587, %v533
  %v596 = vmul.f32 %v588, %v534
  %v597 = vmul.f32 %v589, %v535
  %v598 = vmul.f32 %v590, %v536
  %v599 = vmul.f32 %v591, %v537
  %v600 = vmul.f32 %v592, %v538
  %v601 = vmul.f32 %v593, %v539
  %v602 = vmul.f32 %v594, %v540
  %v603 = vsub.f32 1.0, %v525
  %v604 = vsub.f32 1.0, %v526
  %v605 = vsub.f32 1.0, %v527
  %v606 = vsub.f32 1.0, %v528
  %v607 = vsub.f32 1.0, %v529
  %v608 = vsub.f32 1.0, %v530
  %v609 = vsub.f32 1.0, %v531
  %v610 = vsub.f32 1.0, %v532
  %v611 = vmul.f32 %v603, %v545
  %v612 = vmul.f32 %v604, %v545
  %v613 = vmul.f32 %v605, %v545
  %v614 = vmul.f32 %v606, %v545
  %v615 = vmul.f32 %v607, %v545
  %v616 = vmul.f32 %v608, %v545
  %v617 = vmul.f32 %v609, %v545
  %v618 = vmul.f32 %v610, %v545
  %v619 = vadd.f32 %v595, %v611
  %v620 = vadd.f32 %v596, %v612
  %v621 = vadd.f32 %v597, %v613
  %v622 = vadd.f32 %v598, %v614
  %v623 = vadd.f32 %v599, %v615
  %v624 = vadd.f32 %v600, %v616
  %v625 = vadd.f32 %v601, %v617
  %v626 = vadd.f32 %v602, %v618
  %v627 = vmul.f32 %v525, 0.003087115
  %v628 = vmul.f32 %v526, 0.003087115
  %v629 = vmul.f32 %v527, 0.003087115
  %v630 = vmul.f32 %v528, 0.003087115
  %v631 = vmul.f32 %v529, 0.003087115
  %v632 = vmul.f32 %v530, 0.003087115
  %v633 = vmul.f32 %v531, 0.003087115
  %v634 = vmul.f32 %v532, 0.003087115
  %v635 = vadd.f32 %v579, %v627
  %v636 = vadd.f32 %v580, %v628
  %v637 = vadd.f32 %v581, %v629
  %v638 = vadd.f32 %v582, %v630
  %v639 = vadd.f32 %v583, %v631
  %v640 = vadd.f32 %v584, %v632
  %v641 = vadd.f32 %v585, %v633
  %v642 = vadd.f32 %v586, %v634
  %v643 = vmax.f32 %v635, 1e-15
  %v644 = vmax.f32 %v636, 1e-15
  %v645 = vmax.f32 %v637, 1e-15
  %v646 = vmax.f32 %v638, 1e-15
  %v647 = vmax.f32 %v639, 1e-15
  %v648 = vmax.f32 %v640, 1e-15
  %v649 = vmax.f32 %v641, 1e-15
  %v650 = vmax.f32 %v642, 1e-15
  %v651 = vrcp.pop %v643
  %v652 = vmul.f32 1.0, %v651
  %v653 = vrcp.pop %v644
  %v654 = vmul.f32 1.0, %v653
  %v655 = vrcp.pop %v645
  %v656 = vmul.f32 1.0, %v655
  %v657 = vrcp.pop %v646
  %v658 = vmul.f32 1.0, %v657
  %v659 = vrcp.pop %v647
  %v660 = vmul.f32 1.0, %v659
  %v661 = vrcp.pop %v648
  %v662 = vmul.f32 1.0, %v661
  %v663 = vrcp.pop %v649
  %v664 = vmul.f32 1.0, %v663
  %v665 = vrcp.pop %v650
  %v666 = vmul.f32 1.0, %v665
  %v667 = vmul.f32 %v619, %v652
  %v668 = vmul.f32 %v620, %v654
  %v669 = vmul.f32 %v621, %v656
  %v670 = vmul.f32 %v622, %v658
  %v671 = vmul.f32 %v623, %v660
  %v672 = vmul.f32 %v624, %v662
  %v673 = vmul.f32 %v625, %v664
  %v674 = vmul.f32 %v626, %v666
  %v675 = vmul.f32 %v667, %v667
  %v676 = vmul.f32 %v668, %v668
  %v677 = vmul.f32 %v669, %v669
  %v678 = vmul.f32 %v670, %v670
  %v679 = vmul.f32 %v671, %v671
  %v680 = vmul.f32 %v672, %v672
  %v681 = vmul.f32 %v673, %v673
  %v682 = vmul.f32 %v674, %v674
  %683 = vadd.xlane.f32.xlu0 %v675
  %v684 = vpop.xlane.xlu0 %683
  %685 = vadd.xlane.f32.xlu0 %v676
  %v686 = vpop.xlane.xlu0 %685
  %687 = vadd.xlane.f32.xlu0 %v677
  %v688 = vpop.xlane.xlu0 %687
  %689 = vadd.xlane.f32.xlu0 %v678
  %v690 = vpop.xlane.xlu0 %689
  %691 = vadd.xlane.f32.xlu0 %v679
  %v692 = vpop.xlane.xlu0 %691
  %693 = vadd.xlane.f32.xlu0 %v680
  %v694 = vpop.xlane.xlu0 %693
  %695 = vadd.xlane.f32.xlu0 %v681
  %v696 = vpop.xlane.xlu0 %695
  %697 = vadd.xlane.f32.xlu0 %v682
  %v698 = vpop.xlane.xlu0 %697
  %v699 = vrsqrt.pop %v684
  %v700 = vmul.f32 %v684, %v699
  %vm701 = vcmp.eq.f32.partialorder %v684, inf
  %v702 = vsel %vm701, %v684, %v700
  %vm703 = vcmp.eq.f32.partialorder %v684, 0.0
  %v704 = vand.u32 %v684, 2147483648
  %v705 = vsel %vm703, %v704, %v702
  %v706 = vrsqrt.pop %v686
  %v707 = vmul.f32 %v686, %v706
  %vm708 = vcmp.eq.f32.partialorder %v686, inf
  %v709 = vsel %vm708, %v686, %v707
  %vm710 = vcmp.eq.f32.partialorder %v686, 0.0
  %v711 = vand.u32 %v686, 2147483648
  %v712 = vsel %vm710, %v711, %v709
  %v713 = vrsqrt.pop %v688
  %v714 = vmul.f32 %v688, %v713
  %vm715 = vcmp.eq.f32.partialorder %v688, inf
  %v716 = vsel %vm715, %v688, %v714
  %vm717 = vcmp.eq.f32.partialorder %v688, 0.0
  %v718 = vand.u32 %v688, 2147483648
  %v719 = vsel %vm717, %v718, %v716
  %v720 = vrsqrt.pop %v690
  %v721 = vmul.f32 %v690, %v720
  %vm722 = vcmp.eq.f32.partialorder %v690, inf
  %v723 = vsel %vm722, %v690, %v721
  %vm724 = vcmp.eq.f32.partialorder %v690, 0.0
  %v725 = vand.u32 %v690, 2147483648
  %v726 = vsel %vm724, %v725, %v723
  %v727 = vrsqrt.pop %v692
  %v728 = vmul.f32 %v692, %v727
  %vm729 = vcmp.eq.f32.partialorder %v692, inf
  %v730 = vsel %vm729, %v692, %v728
  %vm731 = vcmp.eq.f32.partialorder %v692, 0.0
  %v732 = vand.u32 %v692, 2147483648
  %v733 = vsel %vm731, %v732, %v730
  %v734 = vrsqrt.pop %v694
  %v735 = vmul.f32 %v694, %v734
  %vm736 = vcmp.eq.f32.partialorder %v694, inf
  %v737 = vsel %vm736, %v694, %v735
  %vm738 = vcmp.eq.f32.partialorder %v694, 0.0
  %v739 = vand.u32 %v694, 2147483648
  %v740 = vsel %vm738, %v739, %v737
  %v741 = vrsqrt.pop %v696
  %v742 = vmul.f32 %v696, %v741
  %vm743 = vcmp.eq.f32.partialorder %v696, inf
  %v744 = vsel %vm743, %v696, %v742
  %vm745 = vcmp.eq.f32.partialorder %v696, 0.0
  %v746 = vand.u32 %v696, 2147483648
  %v747 = vsel %vm745, %v746, %v744
  %v748 = vrsqrt.pop %v698
  %v749 = vmul.f32 %v698, %v748
  %vm750 = vcmp.eq.f32.partialorder %v698, inf
  %v751 = vsel %vm750, %v698, %v749
  %vm752 = vcmp.eq.f32.partialorder %v698, 0.0
  %v753 = vand.u32 %v698, 2147483648
  %v754 = vsel %vm752, %v753, %v751
  %v755 = vmax.f32 %v705, 1e-15
  %v756 = vmax.f32 %v712, 1e-15
  %v757 = vmax.f32 %v719, 1e-15
  %v758 = vmax.f32 %v726, 1e-15
  %v759 = vmax.f32 %v733, 1e-15
  %v760 = vmax.f32 %v740, 1e-15
  %v761 = vmax.f32 %v747, 1e-15
  %v762 = vmax.f32 %v754, 1e-15
  %v763 = vrcp.pop %v755
  %v764 = vmul.f32 0.996, %v763
  %v765 = vrcp.pop %v756
  %v766 = vmul.f32 0.996, %v765
  %v767 = vrcp.pop %v757
  %v768 = vmul.f32 0.996, %v767
  %v769 = vrcp.pop %v758
  %v770 = vmul.f32 0.996, %v769
  %v771 = vrcp.pop %v759
  %v772 = vmul.f32 0.996, %v771
  %v773 = vrcp.pop %v760
  %v774 = vmul.f32 0.996, %v773
  %v775 = vrcp.pop %v761
  %v776 = vmul.f32 0.996, %v775
  %v777 = vrcp.pop %v762
  %v778 = vmul.f32 0.996, %v777
  %vm779 = vcmp.gt.f32.partialorder %v755, 0.996
  %vm780 = vcmp.gt.f32.partialorder %v756, 0.996
  %vm781 = vcmp.gt.f32.partialorder %v757, 0.996
  %vm782 = vcmp.gt.f32.partialorder %v758, 0.996
  %vm783 = vcmp.gt.f32.partialorder %v759, 0.996
  %vm784 = vcmp.gt.f32.partialorder %v760, 0.996
  %vm785 = vcmp.gt.f32.partialorder %v761, 0.996
  %vm786 = vcmp.gt.f32.partialorder %v762, 0.996
  %v787 = vmul.f32 %v667, %v764
  %v788 = vmul.f32 %v668, %v766
  %v789 = vmul.f32 %v669, %v768
  %v790 = vmul.f32 %v670, %v770
  %v791 = vmul.f32 %v671, %v772
  %v792 = vmul.f32 %v672, %v774
  %v793 = vmul.f32 %v673, %v776
  %v794 = vmul.f32 %v674, %v778
  %v795 = vsel %vm779, 1, 0
  %v796 = vsel %vm780, 1, 0
  %v797 = vsel %vm781, 1, 0
  %v798 = vsel %vm782, 1, 0
  %v799 = vsel %vm783, 1, 0
  %v800 = vsel %vm784, 1, 0
  %v801 = vsel %vm785, 1, 0
  %v802 = vsel %vm786, 1, 0
  %vm803 = vcmp.eq.s32.totalorder %v795, 1
  %vm804 = vcmp.eq.s32.totalorder %v796, 1
  %vm805 = vcmp.eq.s32.totalorder %v797, 1
  %vm806 = vcmp.eq.s32.totalorder %v798, 1
  %vm807 = vcmp.eq.s32.totalorder %v799, 1
  %vm808 = vcmp.eq.s32.totalorder %v800, 1
  %vm809 = vcmp.eq.s32.totalorder %v801, 1
  %vm810 = vcmp.eq.s32.totalorder %v802, 1
  %v811 = vsel %vm803, %v787, %v667
  %v812 = vsel %vm804, %v788, %v668
  %v813 = vsel %vm805, %v789, %v669
  %v814 = vsel %vm806, %v790, %v670
  %v815 = vsel %vm807, %v791, %v671
  %v816 = vsel %vm808, %v792, %v672
  %v817 = vsel %vm809, %v793, %v673
  %v818 = vsel %vm810, %v794, %v674
  %819 = vst [vmem:[%s3] sm:$0xff] %v811
  %820 = vst [vmem:[%s3 + $0x8] sm:$0xff] %v812
  %821 = vst [vmem:[%s3 + $0x10] sm:$0xff] %v813
  %822 = vst [vmem:[%s3 + $0x18] sm:$0xff] %v814
  %823 = vst [vmem:[%s3 + $0x20] sm:$0xff] %v815
  %824 = vst [vmem:[%s3 + $0x28] sm:$0xff] %v816
  %825 = vst [vmem:[%s3 + $0x30] sm:$0xff] %v817
  %826 = vst [vmem:[%s3 + $0x38] sm:$0xff] %v818
  // Predicated region
  $region14: #{apply.1} parent=0 // pred_check
    _
  $region15: #{apply.1} parent=0 // pred_check_branch
    %828 = sbr.rel (0) target = $region17
  $region16: #{apply.1} parent=0 // pred_region
    _
  $region17: #{apply.1} parent=0 // pred_fallthru
    _
  // Predicated region
  $region18: #{apply.1} parent=0 // pred_check
    _
  $region19: #{apply.1} parent=0 // pred_check_branch
    %830 = sbr.rel (0) target = $region21
  $region20: #{apply.1} parent=0 // pred_region
    _
  $region21: #{apply.1} parent=0 // pred_fallthru
    _

</llo_original>
